<compile_context>
chip_gen: v7x
topology: tpu7x:2x2x1
jax: 0.10.0
libtpu: 0.0.40
codegen_flags: <defaults>
</compile_context>

<pallas_src>
import functools

import jax
import jax.numpy as jnp
import numpy as np
from jax.experimental import pallas as pl
from jax.experimental.pallas import tpu as pltpu


def _round_up(a, b):
    return -(-a // b) * b


def _dice_partial_kernel(x_ref, t_ref, inter_ref, card_ref, *,
                         num_classes, tiles_per_block, tile_h, h_valid,
                         need_row_mask):
    """One (parallel-block p, batch n, H-tile h) grid step.

    x_ref:     (1, C, TH, Wp)  logits tile (any float dtype; upcast to f32)
    t_ref:     (1, TH, Wp)     int32 class-index targets tile
    inter_ref: (1, C, Wp)      f32 per-parallel-block intersection partial sums
    card_ref:  (1, C, Wp)      f32 per-parallel-block cardinality partial sums
    """
    n = pl.program_id(1)
    h = pl.program_id(2)

    @pl.when(jnp.logical_and(n == 0, h == 0))
    def _init():
        inter_ref[...] = jnp.zeros_like(inter_ref)
        card_ref[...] = jnp.zeros_like(card_ref)

    x = x_ref[0].astype(jnp.float32)            # (C, TH, Wp)
    t = t_ref[0]                                # (TH, Wp) int32

    # Numerically-stable softmax over the class dim. One EUP reciprocal per
    # pixel (approx + Newton refinement ~= f32-exact) instead of C divides.
    m = jnp.max(x, axis=0)                      # (TH, Wp)
    e = jnp.exp(x - m[None, :, :])              # (C, TH, Wp)
    denom = jnp.sum(e, axis=0)                  # (TH, Wp)
    r = pl.reciprocal(denom, approx=True)
    r = r * (2.0 - denom * r)                   # Newton step -> f32 accuracy

    if need_row_mask:
        # Rows >= h_valid are wrapper-added padding; they must not contribute
        # to the (C, W) sums (the reduction runs over batch and H).
        p = pl.program_id(0)
        base = (p * tiles_per_block + h) * tile_h
        rows = base + jax.lax.broadcasted_iota(jnp.int32, (tile_h, 1), 0)
        valid = rows < h_valid                  # (TH, 1) bool
        r = jnp.where(valid, r, 0.0)            # zeroes probas on padded rows
    else:
        valid = None

    # Statically unrolled loop over classes: no C-sized iota / one-hot / probas
    # temporaries; only per-class (TH, Wp) slabs are live inside the loop.
    inters = []
    cards = []
    for c in range(num_classes):
        probas_c = e[c] * r                                     # (TH, Wp)
        mask_c = t == c                                         # (TH, Wp) bool
        if valid is not None:
            mask_c = jnp.logical_and(mask_c, valid)
        inters.append(jnp.sum(jnp.where(mask_c, probas_c, 0.0),
                              axis=0, keepdims=True))           # (1, Wp)
        cards.append(jnp.sum(probas_c, axis=0, keepdims=True)
                     + jnp.sum(mask_c.astype(jnp.float32),
                               axis=0, keepdims=True))          # (1, Wp)

    inter_ref[...] += jnp.concatenate(inters, axis=0)[None]     # (1, C, Wp)
    card_ref[...] += jnp.concatenate(cards, axis=0)[None]


def _tpu_vmem_capacity_bytes():
    try:
        return int(pltpu.get_tpu_info().vmem_capacity_bytes)
    except Exception:
        return 64 << 20   # conservative (v7x-sized) fallback


def _plan_tiling(C, H, W, x_itemsize):
    """Pick (n_par, nh, th, h_pad, w_pad, vmem_limit) for the kernel grid."""
    # Lane-dense width: pad to a multiple of 128 when W is large enough that
    # the padding overhead is small; below 128 the full-dim block is legal.
    w_pad = _round_up(W, 128) if W > 128 else W

    # Sublane granularity of the logits block (f32: 8, bf16: 16).
    sub = 8 if x_itemsize >= 4 else (16 if x_itemsize == 2 else 32)

    # Generation-aware scoped-VMEM budget (~38 MiB of 64 on v7x, ~76 of 128 on
    # v5e/v6e).
    vmem_cap = _tpu_vmem_capacity_bytes()
    vmem_limit = max(16 << 20, min(int(vmem_cap * 0.6), 96 << 20))

    # Per-H-row VMEM cost: double-buffered x and target input blocks plus ~3
    # C-sized f32 temporaries (f32 upcast, exp, slack).
    bytes_per_row = w_pad * (2 * C * x_itemsize + 2 * 4 + 3 * C * 4)
    fixed_bytes = 4 * C * w_pad * 4 + (4 << 20)   # output blocks + headroom
    rows_vmem = max(sub, (vmem_limit - fixed_bytes) // bytes_per_row)
    # Keep the f32 working block around ~8 MiB so each grid step's HBM DMA is
    # several microseconds (amortizes the ~0.35 us per-step overhead).
    rows_dma = max(sub, (8 << 20) // (C * w_pad * 4))
    k_budget = max(1, int(min(rows_vmem, rows_dma)) // sub)

    hg = -(-H // sub)                          # H in units of `sub` rows
    if hg <= k_budget:
        # Whole H fits in a single tile: nothing to split across TensorCores.
        n_par, nh, th = 1, 1, hg * sub
    else:
        # Split the H tiles into two groups -> leading "parallel" grid axis
        # feeds both v7x TensorCores (near-zero cost on 1-TC v5e/v6e).
        n_par = 2
        nt = 2 * (-(-hg // (2 * k_budget)))    # even total tile count
        k = -(-hg // nt)                       # rows-of-`sub` per tile
        th = k * sub
        nh = nt // 2
    h_pad = n_par * nh * th
    return n_par, nh, th, h_pad, w_pad, int(vmem_limit)


def dice_loss_single(x, targets, eps=1e-7):
    """Dice loss for one logits tensor x: (N, C, H, W); targets: (N, H, W) ints.

    x may be float32 or bfloat16 (upcast to f32 inside the kernel)."""
    N, C, H, W = x.shape
    x_itemsize = jnp.dtype(x.dtype).itemsize
    n_par, nh, th, h_pad, w_pad, vmem_limit = _plan_tiling(C, H, W, x_itemsize)

    targets = targets.astype(jnp.int32)
    if (h_pad, w_pad) != (H, W):
        x = jnp.pad(x, ((0, 0), (0, 0), (0, h_pad - H), (0, w_pad - W)))
        targets = jnp.pad(targets, ((0, 0), (0, h_pad - H), (0, w_pad - W)))

    kernel = functools.partial(
        _dice_partial_kernel, num_classes=C, tiles_per_block=nh, tile_h=th,
        h_valid=H, need_row_mask=(h_pad != H))

    cost = pl.CostEstimate(
        flops=int(10 * N * C * h_pad * w_pad),
        transcendentals=int(N * C * h_pad * w_pad),       # the exp in softmax
        bytes_accessed=int(N * C * h_pad * w_pad * x_itemsize
                           + N * h_pad * w_pad * 4
                           + 2 * n_par * C * w_pad * 4),
    )

    inter, card = pl.pallas_call(
        kernel,
        out_shape=(jax.ShapeDtypeStruct((n_par, C, w_pad), jnp.float32),
                   jax.ShapeDtypeStruct((n_par, C, w_pad), jnp.float32)),
        grid_spec=pltpu.PrefetchScalarGridSpec(
            num_scalar_prefetch=0,
            grid=(n_par, N, nh),
            in_specs=[
                pl.BlockSpec((1, C, th, w_pad),
                             lambda pi, ni, hi: (ni, 0, pi * nh + hi, 0)),
                pl.BlockSpec((1, th, w_pad),
                             lambda pi, ni, hi: (ni, pi * nh + hi, 0)),
            ],
            out_specs=(
                pl.BlockSpec((1, C, w_pad), lambda pi, ni, hi: (pi, 0, 0)),
                pl.BlockSpec((1, C, w_pad), lambda pi, ni, hi: (pi, 0, 0)),
            ),
        ),
        compiler_params=pltpu.CompilerParams(
            # parallel axis: independent partial sums (uses both v7x cores);
            # batch + H axes accumulate into the resident per-block outputs.
            dimension_semantics=("parallel", "arbitrary", "arbitrary"),
            vmem_limit_bytes=vmem_limit,
        ),
        cost_estimate=cost,
    )(x, targets)

    # Tiny XLA epilogue: combine per-parallel-block partial sums, drop padded
    # W columns, and take the (C, W)-mean dice exactly like the PyTorch code.
    inter = jnp.sum(inter, axis=0)[:, :W]
    card = jnp.sum(card, axis=0)[:, :W]
    dice = 2.0 * inter / (card + eps)
    return 1.0 - jnp.mean(dice)


class DiceLoss:
    """JAX/Pallas port of the PyTorch DiceLoss module (forward only)."""

    def __init__(self, num_classes, weight=None, size_average=True):
        self.num_classes = num_classes

    def __call__(self, inputs, targets, smooth=1, eps=1e-7):
        # `smooth` is unused in the original forward as well.
        losses = {}
        for name, x in inputs.items():
            assert x.shape[1] == self.num_classes
            losses[name] = dice_loss_single(x, targets, eps=eps)
        return losses


def _dice_loss_ref(x, targets, num_classes, eps=1e-7):
    """Pure-JAX reference mirroring the PyTorch code exactly."""
    one_hot = jax.nn.one_hot(targets, num_classes)                  # (N, H, W, C)
    one_hot = jnp.transpose(one_hot, (0, 3, 1, 2)).astype(x.dtype)  # (N, C, H, W)
    probas = jax.nn.softmax(x.astype(jnp.float32), axis=1)
    dims = (0, 2)   # (0,) + tuple(range(2, targets.ndim)) with targets.ndim == 3
    intersection = jnp.sum(probas * one_hot, axis=dims)
    cardinality = jnp.sum(probas + one_hot, axis=dims)
    dice_loss = jnp.mean(2.0 * intersection / (cardinality + eps))
    return 1.0 - dice_loss


if __name__ == "__main__":
    key = jax.random.PRNGKey(0)
    N, C, H, W = 2, 4, 16, 16

    kx1, kx2, kt = jax.random.split(key, 3)
    inputs = {
        "seg_head_a": jax.random.normal(kx1, (N, C, H, W), dtype=jnp.float32),
        "seg_head_b": jax.random.normal(kx2, (N, C, H, W), dtype=jnp.float32),
    }
    targets = jax.random.randint(kt, (N, H, W), 0, C, dtype=jnp.int32)

    loss_fn = DiceLoss(num_classes=C)
    losses = loss_fn(inputs, targets)
    losses = jax.block_until_ready(losses)

    for name, x in inputs.items():
        ref = np.asarray(_dice_loss_ref(x, targets, C))
        got = np.asarray(losses[name])
        assert np.allclose(got, ref, rtol=1e-5, atol=1e-5), (name, got, ref)

    print("KERNEL_OK")
</pallas_src>

<mosaic_0001>
module attributes {stable_mosaic.version = 11 : i64} {
  func.func @_dice_partial_kernel(%arg0: i32, %arg1: i32, %arg2: i32, %arg3: memref<1x4x16x16xf32, #tpu.memory_space<vmem>>, %arg4: memref<1x16x16xi32, #tpu.memory_space<vmem>>, %arg5: memref<1x4x16xf32, #tpu.memory_space<vmem>>, %arg6: memref<1x4x16xf32, #tpu.memory_space<vmem>>) attributes {dimension_semantics = [#tpu.dimension_semantics<parallel>, #tpu.dimension_semantics<arbitrary>, #tpu.dimension_semantics<arbitrary>], iteration_bounds = array<i64: 1, 2, 1>, scalar_prefetch = 0 : i64, scratch_operands = 0 : i64, tpu.core_type = #tpu.core_type<tc>, window_params = [{transform_indices = @transform_0, window_bounds = array<i64: 1, 4, 16, 16>}, {transform_indices = @transform_1, window_bounds = array<i64: 1, 16, 16>}, {transform_indices = @transform_2, window_bounds = array<i64: 1, 4, 16>}, {transform_indices = @transform_3, window_bounds = array<i64: 1, 4, 16>}]} {
    %c0_i32 = arith.constant 0 : i32
    %0 = arith.cmpi eq, %arg1, %c0_i32 : i32
    %c0_i32_0 = arith.constant 0 : i32
    %1 = arith.cmpi eq, %arg2, %c0_i32_0 : i32
    %2 = arith.andi %0, %1 : i1
    %3 = arith.extui %2 : i1 to i32
    %c0_i32_1 = arith.constant 0 : i32
    %4 = arith.cmpi ne, %3, %c0_i32_1 : i32
    scf.if %4 {
      %cst_39 = arith.constant 0.000000e+00 : f32
      %94 = vector.broadcast %cst_39 : f32 to vector<1x4x16xf32>
      %c0_40 = arith.constant 0 : index
      %c0_41 = arith.constant 0 : index
      %c0_42 = arith.constant 0 : index
      %95 = vector.load %arg5[%c0_40, %c0_41, %c0_42] : memref<1x4x16xf32, #tpu.memory_space<vmem>>, vector<1x4x16xf32>
      tpu.vector_store %arg5[%c0_40, %c0_41, %c0_42], %94 {strides = array<i32>} : memref<1x4x16xf32, #tpu.memory_space<vmem>>, vector<1x4x16xf32>,
      %cst_43 = arith.constant 0.000000e+00 : f32
      %96 = vector.broadcast %cst_43 : f32 to vector<1x4x16xf32>
      %c0_44 = arith.constant 0 : index
      %c0_45 = arith.constant 0 : index
      %c0_46 = arith.constant 0 : index
      %97 = vector.load %arg6[%c0_44, %c0_45, %c0_46] : memref<1x4x16xf32, #tpu.memory_space<vmem>>, vector<1x4x16xf32>
      tpu.vector_store %arg6[%c0_44, %c0_45, %c0_46], %96 {strides = array<i32>} : memref<1x4x16xf32, #tpu.memory_space<vmem>>, vector<1x4x16xf32>,
    } else {
    }
    %c0 = arith.constant 0 : index
    %c0_2 = arith.constant 0 : index
    %c0_3 = arith.constant 0 : index
    %c0_4 = arith.constant 0 : index
    %5 = vector.load %arg3[%c0, %c0_2, %c0_3, %c0_4] : memref<1x4x16x16xf32, #tpu.memory_space<vmem>>, vector<1x4x16x16xf32>
    %6 = vector.shape_cast %5 : vector<1x4x16x16xf32> to vector<4x16x16xf32>
    %c0_5 = arith.constant 0 : index
    %c0_6 = arith.constant 0 : index
    %c0_7 = arith.constant 0 : index
    %7 = vector.load %arg4[%c0_5, %c0_6, %c0_7] : memref<1x16x16xi32, #tpu.memory_space<vmem>>, vector<1x16x16xi32>
    %8 = vector.shape_cast %7 : vector<1x16x16xi32> to vector<16x16xi32>
    %cst = arith.constant dense<0xFF800000> : vector<16x16xf32>
    %9 = vector.multi_reduction <maximumf>, %6, %cst [0] : vector<4x16x16xf32> to vector<16x16xf32>
    %10 = vector.shape_cast %9 : vector<16x16xf32> to vector<1x16x16xf32>
    %11 = vector.broadcast %10 : vector<1x16x16xf32> to vector<4x16x16xf32>
    %12 = arith.subf %6, %11 : vector<4x16x16xf32>
    %13 = math.exp %12 : vector<4x16x16xf32>
    %cst_8 = arith.constant dense<0.000000e+00> : vector<16x16xf32>
    %14 = vector.multi_reduction <add>, %13, %cst_8 [0] : vector<4x16x16xf32> to vector<16x16xf32>
    %15 = tpu.reciprocal %14 {approx = true} : vector<16x16xf32> -> vector<16x16xf32>
    %16 = arith.mulf %14, %15 : vector<16x16xf32>
    %cst_9 = arith.constant 2.000000e+00 : f32
    %17 = vector.broadcast %cst_9 : f32 to vector<16x16xf32>
    %18 = arith.subf %17, %16 : vector<16x16xf32>
    %19 = arith.mulf %15, %18 : vector<16x16xf32>
    %20 = vector.extract_strided_slice %13 {offsets = [0, 0, 0], sizes = [1, 16, 16], strides = [1, 1, 1]} : vector<4x16x16xf32> to vector<1x16x16xf32>
    %21 = vector.shape_cast %20 : vector<1x16x16xf32> to vector<16x16xf32>
    %22 = arith.mulf %21, %19 : vector<16x16xf32>
    %c0_i32_10 = arith.constant 0 : i32
    %23 = vector.broadcast %c0_i32_10 : i32 to vector<16x16xi32>
    %24 = arith.cmpi eq, %8, %23 : vector<16x16xi32>
    %cst_11 = arith.constant 0.000000e+00 : f32
    %25 = vector.broadcast %cst_11 : f32 to vector<16x16xf32>
    %26 = arith.select %24, %22, %25 : vector<16x16xi1>, vector<16x16xf32>
    %cst_12 = arith.constant dense<0.000000e+00> : vector<16xf32>
    %27 = vector.multi_reduction <add>, %26, %cst_12 [0] : vector<16x16xf32> to vector<16xf32>
    %28 = vector.shape_cast %27 : vector<16xf32> to vector<1x16xf32>
    %cst_13 = arith.constant dense<0.000000e+00> : vector<16xf32>
    %29 = vector.multi_reduction <add>, %22, %cst_13 [0] : vector<16x16xf32> to vector<16xf32>
    %30 = vector.shape_cast %29 : vector<16xf32> to vector<1x16xf32>
    %31 = arith.extui %24 : vector<16x16xi1> to vector<16x16xi32>
    %32 = arith.sitofp %31 : vector<16x16xi32> to vector<16x16xf32>
    %cst_14 = arith.constant dense<0.000000e+00> : vector<16xf32>
    %33 = vector.multi_reduction <add>, %32, %cst_14 [0] : vector<16x16xf32> to vector<16xf32>
    %34 = vector.shape_cast %33 : vector<16xf32> to vector<1x16xf32>
    %35 = arith.addf %30, %34 : vector<1x16xf32>
    %36 = vector.extract_strided_slice %13 {offsets = [1, 0, 0], sizes = [1, 16, 16], strides = [1, 1, 1]} : vector<4x16x16xf32> to vector<1x16x16xf32>
    %37 = vector.shape_cast %36 : vector<1x16x16xf32> to vector<16x16xf32>
    %38 = arith.mulf %37, %19 : vector<16x16xf32>
    %c1_i32 = arith.constant 1 : i32
    %39 = vector.broadcast %c1_i32 : i32 to vector<16x16xi32>
    %40 = arith.cmpi eq, %8, %39 : vector<16x16xi32>
    %cst_15 = arith.constant 0.000000e+00 : f32
    %41 = vector.broadcast %cst_15 : f32 to vector<16x16xf32>
    %42 = arith.select %40, %38, %41 : vector<16x16xi1>, vector<16x16xf32>
    %cst_16 = arith.constant dense<0.000000e+00> : vector<16xf32>
    %43 = vector.multi_reduction <add>, %42, %cst_16 [0] : vector<16x16xf32> to vector<16xf32>
    %44 = vector.shape_cast %43 : vector<16xf32> to vector<1x16xf32>
    %cst_17 = arith.constant dense<0.000000e+00> : vector<16xf32>
    %45 = vector.multi_reduction <add>, %38, %cst_17 [0] : vector<16x16xf32> to vector<16xf32>
    %46 = vector.shape_cast %45 : vector<16xf32> to vector<1x16xf32>
    %47 = arith.extui %40 : vector<16x16xi1> to vector<16x16xi32>
    %48 = arith.sitofp %47 : vector<16x16xi32> to vector<16x16xf32>
    %cst_18 = arith.constant dense<0.000000e+00> : vector<16xf32>
    %49 = vector.multi_reduction <add>, %48, %cst_18 [0] : vector<16x16xf32> to vector<16xf32>
    %50 = vector.shape_cast %49 : vector<16xf32> to vector<1x16xf32>
    %51 = arith.addf %46, %50 : vector<1x16xf32>
    %52 = vector.extract_strided_slice %13 {offsets = [2, 0, 0], sizes = [1, 16, 16], strides = [1, 1, 1]} : vector<4x16x16xf32> to vector<1x16x16xf32>
    %53 = vector.shape_cast %52 : vector<1x16x16xf32> to vector<16x16xf32>
    %54 = arith.mulf %53, %19 : vector<16x16xf32>
    %c2_i32 = arith.constant 2 : i32
    %55 = vector.broadcast %c2_i32 : i32 to vector<16x16xi32>
    %56 = arith.cmpi eq, %8, %55 : vector<16x16xi32>
    %cst_19 = arith.constant 0.000000e+00 : f32
    %57 = vector.broadcast %cst_19 : f32 to vector<16x16xf32>
    %58 = arith.select %56, %54, %57 : vector<16x16xi1>, vector<16x16xf32>
    %cst_20 = arith.constant dense<0.000000e+00> : vector<16xf32>
    %59 = vector.multi_reduction <add>, %58, %cst_20 [0] : vector<16x16xf32> to vector<16xf32>
    %60 = vector.shape_cast %59 : vector<16xf32> to vector<1x16xf32>
    %cst_21 = arith.constant dense<0.000000e+00> : vector<16xf32>
    %61 = vector.multi_reduction <add>, %54, %cst_21 [0] : vector<16x16xf32> to vector<16xf32>
    %62 = vector.shape_cast %61 : vector<16xf32> to vector<1x16xf32>
    %63 = arith.extui %56 : vector<16x16xi1> to vector<16x16xi32>
    %64 = arith.sitofp %63 : vector<16x16xi32> to vector<16x16xf32>
    %cst_22 = arith.constant dense<0.000000e+00> : vector<16xf32>
    %65 = vector.multi_reduction <add>, %64, %cst_22 [0] : vector<16x16xf32> to vector<16xf32>
    %66 = vector.shape_cast %65 : vector<16xf32> to vector<1x16xf32>
    %67 = arith.addf %62, %66 : vector<1x16xf32>
    %68 = vector.extract_strided_slice %13 {offsets = [3, 0, 0], sizes = [1, 16, 16], strides = [1, 1, 1]} : vector<4x16x16xf32> to vector<1x16x16xf32>
    %69 = vector.shape_cast %68 : vector<1x16x16xf32> to vector<16x16xf32>
    %70 = arith.mulf %69, %19 : vector<16x16xf32>
    %c3_i32 = arith.constant 3 : i32
    %71 = vector.broadcast %c3_i32 : i32 to vector<16x16xi32>
    %72 = arith.cmpi eq, %8, %71 : vector<16x16xi32>
    %cst_23 = arith.constant 0.000000e+00 : f32
    %73 = vector.broadcast %cst_23 : f32 to vector<16x16xf32>
    %74 = arith.select %72, %70, %73 : vector<16x16xi1>, vector<16x16xf32>
    %cst_24 = arith.constant dense<0.000000e+00> : vector<16xf32>
    %75 = vector.multi_reduction <add>, %74, %cst_24 [0] : vector<16x16xf32> to vector<16xf32>
    %76 = vector.shape_cast %75 : vector<16xf32> to vector<1x16xf32>
    %cst_25 = arith.constant dense<0.000000e+00> : vector<16xf32>
    %77 = vector.multi_reduction <add>, %70, %cst_25 [0] : vector<16x16xf32> to vector<16xf32>
    %78 = vector.shape_cast %77 : vector<16xf32> to vector<1x16xf32>
    %79 = arith.extui %72 : vector<16x16xi1> to vector<16x16xi32>
    %80 = arith.sitofp %79 : vector<16x16xi32> to vector<16x16xf32>
    %cst_26 = arith.constant dense<0.000000e+00> : vector<16xf32>
    %81 = vector.multi_reduction <add>, %80, %cst_26 [0] : vector<16x16xf32> to vector<16xf32>
    %82 = vector.shape_cast %81 : vector<16xf32> to vector<1x16xf32>
    %83 = arith.addf %78, %82 : vector<1x16xf32>
    %c0_27 = arith.constant 0 : index
    %c0_28 = arith.constant 0 : index
    %c0_29 = arith.constant 0 : index
    %84 = vector.load %arg5[%c0_27, %c0_28, %c0_29] : memref<1x4x16xf32, #tpu.memory_space<vmem>>, vector<1x4x16xf32>
    %85 = tpu.concatenate %28, %44, %60, %76 in 0 : vector<1x16xf32>, vector<1x16xf32>, vector<1x16xf32>, vector<1x16xf32> -> vector<4x16xf32>
    %86 = vector.shape_cast %85 : vector<4x16xf32> to vector<1x4x16xf32>
    %87 = arith.addf %84, %86 : vector<1x4x16xf32>
    %c0_30 = arith.constant 0 : index
    %c0_31 = arith.constant 0 : index
    %c0_32 = arith.constant 0 : index
    %88 = vector.load %arg5[%c0_30, %c0_31, %c0_32] : memref<1x4x16xf32, #tpu.memory_space<vmem>>, vector<1x4x16xf32>
    tpu.vector_store %arg5[%c0_30, %c0_31, %c0_32], %87 {strides = array<i32>} : memref<1x4x16xf32, #tpu.memory_space<vmem>>, vector<1x4x16xf32>,
    %c0_33 = arith.constant 0 : index
    %c0_34 = arith.constant 0 : index
    %c0_35 = arith.constant 0 : index
    %89 = vector.load %arg6[%c0_33, %c0_34, %c0_35] : memref<1x4x16xf32, #tpu.memory_space<vmem>>, vector<1x4x16xf32>
    %90 = tpu.concatenate %35, %51, %67, %83 in 0 : vector<1x16xf32>, vector<1x16xf32>, vector<1x16xf32>, vector<1x16xf32> -> vector<4x16xf32>
    %91 = vector.shape_cast %90 : vector<4x16xf32> to vector<1x4x16xf32>
    %92 = arith.addf %89, %91 : vector<1x4x16xf32>
    %c0_36 = arith.constant 0 : index
    %c0_37 = arith.constant 0 : index
    %c0_38 = arith.constant 0 : index
    %93 = vector.load %arg6[%c0_36, %c0_37, %c0_38] : memref<1x4x16xf32, #tpu.memory_space<vmem>>, vector<1x4x16xf32>
    tpu.vector_store %arg6[%c0_36, %c0_37, %c0_38], %92 {strides = array<i32>} : memref<1x4x16xf32, #tpu.memory_space<vmem>>, vector<1x4x16xf32>,
    return
  }
  func.func @transform_0(%arg0: i32, %arg1: i32, %arg2: i32) -> (i32, i32, i32, i32) {
    %c1_i32 = arith.constant 1 : i32
    %0 = arith.muli %arg0, %c1_i32 : i32
    %1 = arith.addi %0, %arg2 : i32
    %c0_i32 = arith.constant 0 : i32
    %c0_i32_0 = arith.constant 0 : i32
    %c0_i32_1 = arith.constant 0 : i32
    return %arg1, %c0_i32, %1, %c0_i32_0 : i32, i32, i32, i32
  }
  func.func @transform_1(%arg0: i32, %arg1: i32, %arg2: i32) -> (i32, i32, i32) {
    %c1_i32 = arith.constant 1 : i32
    %0 = arith.muli %arg0, %c1_i32 : i32
    %1 = arith.addi %0, %arg2 : i32
    %c0_i32 = arith.constant 0 : i32
    %c0_i32_0 = arith.constant 0 : i32
    return %arg1, %1, %c0_i32 : i32, i32, i32
  }
  func.func @transform_2(%arg0: i32, %arg1: i32, %arg2: i32) -> (i32, i32, i32) {
    %c0_i32 = arith.constant 0 : i32
    %c0_i32_0 = arith.constant 0 : i32
    %c0_i32_1 = arith.constant 0 : i32
    return %arg0, %c0_i32, %c0_i32_0 : i32, i32, i32
  }
  func.func @transform_3(%arg0: i32, %arg1: i32, %arg2: i32) -> (i32, i32, i32) {
    %c0_i32 = arith.constant 0 : i32
    %c0_i32_0 = arith.constant 0 : i32
    %c0_i32_1 = arith.constant 0 : i32
    return %arg0, %c0_i32, %c0_i32_0 : i32, i32, i32
  }
}

</mosaic_0001>

<llo_original>
// kernel: tpu_custom_call.1
$region0: #{tpu_custom_call.1}
  #allocation0 [shape = 'u32[]', space=smem, size = 0x4, offset = 0x4, fixed_abs, tag = 'smem constant byte address 0x4 - core index']
  #allocation1 [shape = 'u32[144,128]{1,0:T(1,128)}', space=vmem, size = 0x12000, scoped, tag = 'internal scratch']
  %s0 = inlined_call_operand.hbm [shape: f32[2,4,16,16], index: 0, kind: input, shape index: {}]
  %s1 = inlined_call_operand.hbm [shape: s32[2,16,16], index: 1, kind: input, shape index: {}]
  %s2 = inlined_call_operand.hbm [shape: f32[1,4,16], index: 2, kind: output, shape index: {0}]
  %s3 = inlined_call_operand.hbm [shape: f32[1,4,16], index: 3, kind: output, shape index: {1}]
  %4 = xla_tuple %s2, %s3
  %s5 = sld [smem:[#allocation0]]
  $region61: #{tpu_custom_call.1} parent=0
    _
  %s7 = ssub.s32 1, %s5
  %s8 = scalar_select 0, %s7, %s5
  $region1: #{tpu_custom_call.1} parent=0
    #allocation2 [shape = 'u8[65536]{0}', space=vmem, size = 0x10000, scoped, tag = 'input window, operand 0']
    #allocation3 [shape = 's32[2]{0}', space=sflag, size = 0x8, scoped, tag = 'scoped memory for tpu_custom_call.1']
    #allocation4 [shape = 's32[2]{0}', space=sflag, size = 0x8, scoped, tag = 'scoped memory for tpu_custom_call.1']
    #allocation5 [shape = 'u8[16384]{0}', space=vmem, size = 0x4000, scoped, tag = 'input window, operand 1']
    #allocation6 [shape = 's32[2]{0}', space=sflag, size = 0x8, scoped, tag = 'scoped memory for tpu_custom_call.1']
    #allocation7 [shape = 'u8[2048]{0}', space=vmem, size = 0x800, scoped, tag = 'output window, operand 0, single buffered']
    #allocation8 [shape = 'u8[2048]{0}', space=vmem, size = 0x800, scoped, tag = 'output window, operand 1, single buffered']
    #allocation9 [shape = 's32[1]{0}', space=sflag, size = 0x4, scoped, tag = 'scoped memory for tpu_custom_call.1']
    %9 = vsyncpa [#allocation3], 0
    %s10 = scalar_lea.sflag [#allocation3], 1
    %11 = vsyncpa %s10, 0
    %12 = vsyncpa [#allocation6], 0
    %s13 = scalar_lea.sflag [#allocation6], 1
    %14 = vsyncpa %s13, 0
    %15 = vsyncpa [#allocation4], 0
    %16 = vsyncpa [#allocation9], 0
    loop: start=0, step=1, limit=4
    $region2: #{tpu_custom_call.1} parent=1 // loop_pre_header
      _
    $region3: #{tpu_custom_call.1} parent=1 // loop_header
      %s18 = sphi 0, %s22
      %p19 = scmp.ge.s32.totalorder %s18, 4
      %s25 = sphi 0, %s44
      %s26 = sphi 0, %s40
      %s27 = sphi 0, %s36
      %s28 = sphi 0, %s25
      %s29 = sphi 0, %s26
      %s30 = sphi 0, %s27
      %s31 = sphi 0, %s28
      %s32 = sphi 0, %s29
      %s33 = sphi 0, %s30
      %s51 = sphi 0, %s53
      %s54 = sphi 0, %s51
      %s55 = sphi 0, %s54
      %s71 = sphi 0, %s55
      %s81 = sphi 0, %s83
      %s84 = sphi 0, %s81
      %s85 = sphi 0, %s84
      %s101 = sphi 0, %s85
      %s107 = sphi 0, %s109
      %s110 = sphi 0, %s107
      %s111 = sphi 0, %s110
      %s127 = sphi 0, %s111
      %s133 = sphi 0, %s135
      %s136 = sphi 0, %s133
      %s137 = sphi 0, %s136
      %s153 = sphi 0, %s137
    $region4: #{tpu_custom_call.1} parent=1 // loop_header_branch
      %21 = sbr.rel (%p19) target = $region8
    $region5: #{tpu_custom_call.1} parent=1 // loop_body
      %s23 = ssub.s32 %s18, 1
      %s24 = ssub.s32 %s18, 2
      %s34 = sadd.s32 1, %s27
      %p35 = scmp.ge.s32.totalorder %s34, 1
      %s36 = scalar_select %p35, 0, %s34
      %s37 = sadd.s32 1, %s26
      %s38 = scalar_select %p35, %s37, %s26
      %p39 = scmp.ge.s32.totalorder %s38, 2
      %s40 = scalar_select %p39, 0, %s38
      %s41 = sadd.s32 1, %s25
      %s42 = scalar_select %p39, %s41, %s25
      %p43 = scmp.ge.s32.totalorder %s42, 1
      %s44 = scalar_select %p43, 0, %s42
      %s45 = sadd.s32 %s25, %s27
      %s46 = sadd.s32 %s44, %s36
      %s47 = ssub.s32 %s26, %s40
      %s48 = ssub.s32 %s45, %s46
      %s49 = sor.u32 %s47, %s48
      %p50 = scmp.eq.s32.totalorder %s49, 0
      %s52 = sadd.s32 %s51, 1
      %s53 = scalar_select %p50, %s51, %s52
      %p56 = pneg %p50
      %p57 = scmp.eq.s32.totalorder %s18, 1
      %p58 = por %p56, %p57
      %p59 = scmp.ne.s32.totalorder %s51, %s54
      %p60 = scmp.eq.s32.totalorder %s18, 0
      %p61 = por %p59, %p60
      %p62 = scmp.ne.s32.totalorder %s51, %s54
      %p63 = scmp.eq.s32.totalorder %s23, 1
      %p64 = por %p62, %p63
      %p65 = scmp.ne.s32.totalorder %s54, %s55
      %p66 = scmp.eq.s32.totalorder %s23, 0
      %p67 = por %p65, %p66
      %p68 = scmp.ne.s32.totalorder %s54, %s55
      %p69 = scmp.eq.s32.totalorder %s24, 1
      %p70 = por %p68, %p69
      %p72 = scmp.ne.s32.totalorder %s55, %s71
      %p73 = scmp.eq.s32.totalorder %s24, 0
      %p74 = por %p72, %p73
      %s75 = sadd.s32 %s25, %s27
      %s76 = sadd.s32 %s44, %s36
      %s77 = ssub.s32 %s26, %s40
      %s78 = ssub.s32 %s75, %s76
      %s79 = sor.u32 %s77, %s78
      %p80 = scmp.eq.s32.totalorder %s79, 0
      %s82 = sadd.s32 %s81, 1
      %s83 = scalar_select %p80, %s81, %s82
      %p86 = pneg %p80
      %p87 = scmp.eq.s32.totalorder %s18, 1
      %p88 = por %p86, %p87
      %p89 = scmp.ne.s32.totalorder %s81, %s84
      %p90 = scmp.eq.s32.totalorder %s18, 0
      %p91 = por %p89, %p90
      %p92 = scmp.ne.s32.totalorder %s81, %s84
      %p93 = scmp.eq.s32.totalorder %s23, 1
      %p94 = por %p92, %p93
      %p95 = scmp.ne.s32.totalorder %s84, %s85
      %p96 = scmp.eq.s32.totalorder %s23, 0
      %p97 = por %p95, %p96
      %p98 = scmp.ne.s32.totalorder %s84, %s85
      %p99 = scmp.eq.s32.totalorder %s24, 1
      %p100 = por %p98, %p99
      %p102 = scmp.ne.s32.totalorder %s85, %s101
      %p103 = scmp.eq.s32.totalorder %s24, 0
      %p104 = por %p102, %p103
      %s105 = ssub.s32 %s25, %s44
      %p106 = scmp.eq.s32.totalorder %s105, 0
      %s108 = sadd.s32 %s107, 1
      %s109 = scalar_select %p106, %s107, %s108
      %p112 = pneg %p106
      %p113 = scmp.eq.s32.totalorder %s18, 1
      %p114 = por %p112, %p113
      %p115 = scmp.ne.s32.totalorder %s107, %s110
      %p116 = scmp.eq.s32.totalorder %s18, 0
      %p117 = por %p115, %p116
      %p118 = scmp.ne.s32.totalorder %s107, %s110
      %p119 = scmp.eq.s32.totalorder %s23, 1
      %p120 = por %p118, %p119
      %p121 = scmp.ne.s32.totalorder %s110, %s111
      %p122 = scmp.eq.s32.totalorder %s23, 0
      %p123 = por %p121, %p122
      %p124 = scmp.ne.s32.totalorder %s110, %s111
      %p125 = scmp.eq.s32.totalorder %s24, 1
      %p126 = por %p124, %p125
      %p128 = scmp.ne.s32.totalorder %s111, %s127
      %p129 = scmp.eq.s32.totalorder %s24, 0
      %p130 = por %p128, %p129
      %s131 = ssub.s32 %s25, %s44
      %p132 = scmp.eq.s32.totalorder %s131, 0
      %s134 = sadd.s32 %s133, 1
      %s135 = scalar_select %p132, %s133, %s134
      %p138 = pneg %p132
      %p139 = scmp.eq.s32.totalorder %s18, 1
      %p140 = por %p138, %p139
      %p141 = scmp.ne.s32.totalorder %s133, %s136
      %p142 = scmp.eq.s32.totalorder %s18, 0
      %p143 = por %p141, %p142
      %p144 = scmp.ne.s32.totalorder %s133, %s136
      %p145 = scmp.eq.s32.totalorder %s23, 1
      %p146 = por %p144, %p145
      %p147 = scmp.ne.s32.totalorder %s136, %s137
      %p148 = scmp.eq.s32.totalorder %s23, 0
      %p149 = por %p147, %p148
      %p150 = scmp.ne.s32.totalorder %s136, %s137
      %p151 = scmp.eq.s32.totalorder %s24, 1
      %p152 = por %p150, %p151
      %p154 = scmp.ne.s32.totalorder %s137, %s153
      %p155 = scmp.eq.s32.totalorder %s24, 0
      %p156 = por %p154, %p155
      %p157 = scmp.le.s32.totalorder 1, %s18
      %p158 = scmp.lt.s32.totalorder %s18, 3
      %p159 = pnand %p157, %p158
      %p160 = pneg %p159
      // Predicated region
      $region9: #{tpu_custom_call.1} parent=5 // pred_check
        _
      $region10: #{tpu_custom_call.1} parent=5 // pred_check_branch
        %162 = sbr.rel (%p159) target = $region12
      $region11: #{tpu_custom_call.1} parent=5 // pred_region
        %s163 = ssub.s32 %s18, 1
      $region12: #{tpu_custom_call.1} parent=5 // pred_fallthru
        _
      %p164 = scmp.lt.s32.totalorder %s18, 2
      // Predicated region
      $region13: #{tpu_custom_call.1} parent=5 // pred_check
        %p165 = pneg %p164
      $region14: #{tpu_custom_call.1} parent=5 // pred_check_branch
        %167 = sbr.rel (%p165) target = $region16
      $region15: #{tpu_custom_call.1} parent=5 // pred_region
        // Predicated region
        $region17: #{tpu_custom_call.1} parent=15 // pred_check
          %p168 = pneg %p61
        $region18: #{tpu_custom_call.1} parent=15 // pred_check_branch
          %170 = sbr.rel (%p168) target = $region20
        $region19: #{tpu_custom_call.1} parent=15 // pred_region
          %s171 = sand.u32 %s51, 1
          %s172 = scalar_lea.sflag [#allocation3], %s171
          %s173 = sand.u32 %s51, 1
          %s174 = smul.addr %s173, 64
          %s175 = scalar_lea.vmem [#allocation2], %s174
          %s176 = sadd.s32 %s25, %s27
          %s177 = smul.u32 2, %s176
          %s179 = ssub.s32 1024, 1024
          %180 = vsyncadd %s172, %s179
          %s181 = smul.addr %s26, 8
          %s182 = sadd.s32 %s177, %s181
          %s183 = smul.addr %s182, 128
          %s184 = scalar_lea.hbm %s0, %s183
          %s185 = sshll.u32 %s175, 4
          %s186 = int_to_ptr.vmem [resolvable:$true] %s185
          %191 = dma.hbm_to_vmem [thread:$0]  %s184, 1024, %s186, %s172, 128, 128, 8
        $region20: #{tpu_custom_call.1} parent=15 // pred_fallthru
          _
        // Predicated region
        $region21: #{tpu_custom_call.1} parent=15 // pred_check
          %p192 = pneg %p91
        $region22: #{tpu_custom_call.1} parent=15 // pred_check_branch
          %194 = sbr.rel (%p192) target = $region24
        $region23: #{tpu_custom_call.1} parent=15 // pred_region
          %s195 = sand.u32 %s81, 1
          %s196 = scalar_lea.sflag [#allocation6], %s195
          %s197 = sand.u32 %s81, 1
          %s198 = smul.addr %s197, 16
          %s199 = scalar_lea.vmem [#allocation5], %s198
          %s200 = sadd.s32 %s25, %s27
          %s201 = smul.u32 2, %s200
          %s203 = ssub.s32 256, 256
          %204 = vsyncadd %s196, %s203
          %s205 = smul.addr %s26, 2
          %s206 = sadd.s32 %s201, %s205
          %s207 = smul.addr %s206, 128
          %s208 = scalar_lea.hbm %s1, %s207
          %s209 = sshll.u32 %s199, 4
          %s210 = int_to_ptr.vmem [resolvable:$true] %s209
          %215 = dma.hbm_to_vmem [thread:$0]  %s208, 256, %s210, %s196, 128, 128, 8
        $region24: #{tpu_custom_call.1} parent=15 // pred_fallthru
          _
      $region16: #{tpu_custom_call.1} parent=5 // pred_fallthru
        _
      %p216 = scmp.le.s32.totalorder 1, %s18
      %p217 = scmp.lt.s32.totalorder %s18, 3
      %p218 = pnand %p216, %p217
      %p219 = pneg %p218
      // Predicated region
      $region25: #{tpu_custom_call.1} parent=5 // pred_check
        _
      $region26: #{tpu_custom_call.1} parent=5 // pred_check_branch
        %221 = sbr.rel (%p218) target = $region28
      $region27: #{tpu_custom_call.1} parent=5 // pred_region
        %s222 = ssub.s32 %s18, 1
        %s223 = sand.u32 %s54, 1
        %s224 = scalar_lea.sflag [#allocation3], %s223
        %s225 = sand.u32 %s54, 1
        %s226 = smul.addr %s225, 64
        %s227 = scalar_lea.vmem [#allocation2], %s226
        // Predicated region
        $region29: #{tpu_custom_call.1} parent=27 // pred_check
          %p228 = pneg %p67
        $region30: #{tpu_custom_call.1} parent=27 // pred_check_branch
          %230 = sbr.rel (%p228) target = $region32
        $region31: #{tpu_custom_call.1} parent=27 // pred_region
          %231 = dma.done %s224, 1024
        $region32: #{tpu_custom_call.1} parent=27 // pred_fallthru
          _
        %s232 = sand.u32 %s84, 1
        %s233 = scalar_lea.sflag [#allocation6], %s232
        %s234 = sand.u32 %s84, 1
        %s235 = smul.addr %s234, 16
        %s236 = scalar_lea.vmem [#allocation5], %s235
        // Predicated region
        $region33: #{tpu_custom_call.1} parent=27 // pred_check
          %p237 = pneg %p97
        $region34: #{tpu_custom_call.1} parent=27 // pred_check_branch
          %239 = sbr.rel (%p237) target = $region36
        $region35: #{tpu_custom_call.1} parent=27 // pred_region
          %240 = dma.done %s233, 256
        $region36: #{tpu_custom_call.1} parent=27 // pred_fallthru
          _
        %s241 = sand.u32 %s54, 1
        %s242 = scalar_lea.sflag [#allocation3], %s241
        %s243 = sand.u32 %s54, 1
        %s244 = smul.addr %s243, 64
        %s245 = scalar_lea.vmem [#allocation2], %s244
        %p246 = pneg %p67
        %p247 = pneg %p64
        %s248 = sand.u32 %s84, 1
        %s249 = scalar_lea.sflag [#allocation6], %s248
        %s250 = sand.u32 %s84, 1
        %s251 = smul.addr %s250, 16
        %s252 = scalar_lea.vmem [#allocation5], %s251
        %p253 = pneg %p97
        %p254 = pneg %p94
        %p255 = pneg %p123
        %p256 = pneg %p120
        %p257 = pneg %p149
        %p258 = pneg %p146
        %s259 = sadd.s32 %s28, %s30
        %s260 = smul.u32 2, %s259
        %s261 = sadd.s32 %s28, %s30
        %s262 = smul.u32 2, %s261
        %p263 = scmp.eq.s32.totalorder %s29, 0
        %p264 = scmp.eq.s32.totalorder %s30, 0
        %p265 = pnand %p263, %p264
        %p266 = pneg %p265
        // Predicated region
        $region37: #{tpu_custom_call.1} parent=27 // pred_check
          _
        $region38: #{tpu_custom_call.1} parent=27 // pred_check_branch
          %268 = sbr.rel (%p265) target = $region40
        $region39: #{tpu_custom_call.1} parent=27 // pred_region
          %vm269 = vcmask 125952
          %270 = vst.msk [vmem:[#allocation7] sm:$0xf] %vm269, 0.0
          %271 = vst.msk [vmem:[#allocation8] sm:$0xf] %vm269, 0.0
        $region40: #{tpu_custom_call.1} parent=27 // pred_fallthru
          _
        %v272 = vld [vmem:[%s227] sm:$0xff]
        %v273 = vld [vmem:[%s227 + $0x8] sm:$0xff]
        %v274 = vld [vmem:[%s227 + $0x10] sm:$0xff]
        %v275 = vld [vmem:[%s227 + $0x18] sm:$0xff]
        %v276 = vld [vmem:[%s227 + $0x20] sm:$0xff]
        %v277 = vld [vmem:[%s227 + $0x28] sm:$0xff]
        %v278 = vld [vmem:[%s227 + $0x30] sm:$0xff]
        %v279 = vld [vmem:[%s227 + $0x38] sm:$0xff]
        %v280 = vld [vmem:[%s236] sm:$0xff]
        %v281 = vld [vmem:[%s236 + $0x8] sm:$0xff]
        %vm282 = vcmask 130048
        %v283 = vsel %vm282, %v272, -inf
        %v284 = vsel %vm282, %v274, -inf
        %v285 = vsel %vm282, %v276, -inf
        %v286 = vmax.f32 %v283, %v285
        %v287 = vsel %vm282, %v278, -inf
        %v288 = vmax.f32 %v284, %v287
        %v289 = vmax.f32 %v286, %v288
        %v290 = vsel %vm282, %v273, -inf
        %v291 = vsel %vm282, %v275, -inf
        %v292 = vsel %vm282, %v277, -inf
        %v293 = vmax.f32 %v290, %v292
        %v294 = vsel %vm282, %v279, -inf
        %v295 = vmax.f32 %v291, %v294
        %v296 = vmax.f32 %v293, %v295
        %v297 = vsub.f32 %v272, %v289
        %v298 = vsub.f32 %v273, %v296
        %v299 = vsub.f32 %v274, %v289
        %v300 = vsub.f32 %v275, %v296
        %v301 = vsub.f32 %v276, %v289
        %v302 = vsub.f32 %v277, %v296
        %v303 = vsub.f32 %v278, %v289
        %v304 = vsub.f32 %v279, %v296
        %v305 = vmul.f32 %v297, 1.442695
        %v306 = vpow.pop %v305
        %v307 = vmul.f32 %v298, 1.442695
        %v308 = vpow.pop %v307
        %v309 = vmul.f32 %v299, 1.442695
        %v310 = vpow.pop %v309
        %v311 = vmul.f32 %v300, 1.442695
        %v312 = vpow.pop %v311
        %v313 = vmul.f32 %v301, 1.442695
        %v314 = vpow.pop %v313
        %v315 = vmul.f32 %v302, 1.442695
        %v316 = vpow.pop %v315
        %v317 = vmul.f32 %v303, 1.442695
        %v318 = vpow.pop %v317
        %v319 = vmul.f32 %v304, 1.442695
        %v320 = vpow.pop %v319
        %v321 = vsel %vm282, %v306, 0.0
        %v322 = vsel %vm282, %v310, 0.0
        %v323 = vadd.f32 %v321, %v322
        %v324 = vsel %vm282, %v314, 0.0
        %v325 = vadd.f32 %v323, %v324
        %v326 = vsel %vm282, %v318, 0.0
        %v327 = vadd.f32 %v325, %v326
        %v328 = vsel %vm282, %v308, 0.0
        %v329 = vsel %vm282, %v312, 0.0
        %v330 = vadd.f32 %v328, %v329
        %v331 = vsel %vm282, %v316, 0.0
        %v332 = vadd.f32 %v330, %v331
        %v333 = vsel %vm282, %v320, 0.0
        %v334 = vadd.f32 %v332, %v333
        %v335 = vrcp.pop %v327
        %v336 = vrcp.pop %v334
        %v337 = vmul.f32 %v327, %v335
        %v338 = vmul.f32 %v334, %v336
        %v339 = vsub.f32 2.0, %v337
        %v340 = vsub.f32 2.0, %v338
        %v341 = vmul.f32 %v335, %v339
        %v342 = vmul.f32 %v336, %v340
        %v343 = vmul.f32 %v306, %v341
        %v344 = vmul.f32 %v308, %v342
        %vm345 = vcmp.eq.s32.totalorder %v280, 0
        %vm346 = vcmp.eq.s32.totalorder %v281, 0
        %v347 = vsel %vm345, %v343, 0.0
        %v348 = vsel %vm346, %v344, 0.0
        %v349 = vsel %vm282, %v347, 0.0
        %v350 = vsel %vm282, %v348, 0.0
        %v351 = vadd.f32 %v349, %v350
        %v352 = vrot.slane %v351, 4
        %v353 = vadd.f32 %v351, %v352
        %v354 = vrot.slane %v353, 2
        %v355 = vadd.f32 %v353, %v354
        %v356 = vrot.slane %v355, 1
        %v357 = vadd.f32 %v355, %v356
        %v358 = vsel %vm282, %v343, 0.0
        %v359 = vsel %vm282, %v344, 0.0
        %v360 = vadd.f32 %v358, %v359
        %v361 = vrot.slane %v360, 4
        %v362 = vadd.f32 %v360, %v361
        %v363 = vrot.slane %v362, 2
        %v364 = vadd.f32 %v362, %v363
        %v365 = vrot.slane %v364, 1
        %v366 = vadd.f32 %v364, %v365
        %v367 = vsel %vm345, 1, 0
        %v368 = vsel %vm346, 1, 0
        %v369 = vcvt.s32.f32 %v367
        %v370 = vcvt.s32.f32 %v368
        %v371 = vsel %vm282, %v369, 0.0
        %v372 = vsel %vm282, %v370, 0.0
        %v373 = vadd.f32 %v371, %v372
        %v374 = vrot.slane %v373, 4
        %v375 = vadd.f32 %v373, %v374
        %v376 = vrot.slane %v375, 2
        %v377 = vadd.f32 %v375, %v376
        %v378 = vrot.slane %v377, 1
        %v379 = vadd.f32 %v377, %v378
        %v380 = vadd.f32 %v366, %v379
        %v381 = vmul.f32 %v310, %v341
        %v382 = vmul.f32 %v312, %v342
        %vm383 = vcmp.eq.s32.totalorder %v280, 1
        %vm384 = vcmp.eq.s32.totalorder %v281, 1
        %v385 = vsel %vm383, %v381, 0.0
        %v386 = vsel %vm384, %v382, 0.0
        %v387 = vsel %vm282, %v385, 0.0
        %v388 = vsel %vm282, %v386, 0.0
        %v389 = vadd.f32 %v387, %v388
        %v390 = vrot.slane %v389, 4
        %v391 = vadd.f32 %v389, %v390
        %v392 = vrot.slane %v391, 2
        %v393 = vadd.f32 %v391, %v392
        %v394 = vrot.slane %v393, 1
        %v395 = vadd.f32 %v393, %v394
        %v396 = vsel %vm282, %v381, 0.0
        %v397 = vsel %vm282, %v382, 0.0
        %v398 = vadd.f32 %v396, %v397
        %v399 = vrot.slane %v398, 4
        %v400 = vadd.f32 %v398, %v399
        %v401 = vrot.slane %v400, 2
        %v402 = vadd.f32 %v400, %v401
        %v403 = vrot.slane %v402, 1
        %v404 = vadd.f32 %v402, %v403
        %v405 = vsel %vm383, 1, 0
        %v406 = vsel %vm384, 1, 0
        %v407 = vcvt.s32.f32 %v405
        %v408 = vcvt.s32.f32 %v406
        %v409 = vsel %vm282, %v407, 0.0
        %v410 = vsel %vm282, %v408, 0.0
        %v411 = vadd.f32 %v409, %v410
        %v412 = vrot.slane %v411, 4
        %v413 = vadd.f32 %v411, %v412
        %v414 = vrot.slane %v413, 2
        %v415 = vadd.f32 %v413, %v414
        %v416 = vrot.slane %v415, 1
        %v417 = vadd.f32 %v415, %v416
        %v418 = vadd.f32 %v404, %v417
        %v419 = vmul.f32 %v314, %v341
        %v420 = vmul.f32 %v316, %v342
        %vm421 = vcmp.eq.s32.totalorder %v280, 2
        %vm422 = vcmp.eq.s32.totalorder %v281, 2
        %v423 = vsel %vm421, %v419, 0.0
        %v424 = vsel %vm422, %v420, 0.0
        %v425 = vsel %vm282, %v423, 0.0
        %v426 = vsel %vm282, %v424, 0.0
        %v427 = vadd.f32 %v425, %v426
        %v428 = vrot.slane %v427, 4
        %v429 = vadd.f32 %v427, %v428
        %v430 = vrot.slane %v429, 2
        %v431 = vadd.f32 %v429, %v430
        %v432 = vrot.slane %v431, 1
        %v433 = vadd.f32 %v431, %v432
        %v434 = vsel %vm282, %v419, 0.0
        %v435 = vsel %vm282, %v420, 0.0
        %v436 = vadd.f32 %v434, %v435
        %v437 = vrot.slane %v436, 4
        %v438 = vadd.f32 %v436, %v437
        %v439 = vrot.slane %v438, 2
        %v440 = vadd.f32 %v438, %v439
        %v441 = vrot.slane %v440, 1
        %v442 = vadd.f32 %v440, %v441
        %v443 = vsel %vm421, 1, 0
        %v444 = vsel %vm422, 1, 0
        %v445 = vcvt.s32.f32 %v443
        %v446 = vcvt.s32.f32 %v444
        %v447 = vsel %vm282, %v445, 0.0
        %v448 = vsel %vm282, %v446, 0.0
        %v449 = vadd.f32 %v447, %v448
        %v450 = vrot.slane %v449, 4
        %v451 = vadd.f32 %v449, %v450
        %v452 = vrot.slane %v451, 2
        %v453 = vadd.f32 %v451, %v452
        %v454 = vrot.slane %v453, 1
        %v455 = vadd.f32 %v453, %v454
        %v456 = vadd.f32 %v442, %v455
        %v457 = vmul.f32 %v318, %v341
        %v458 = vmul.f32 %v320, %v342
        %vm459 = vcmp.eq.s32.totalorder %v280, 3
        %vm460 = vcmp.eq.s32.totalorder %v281, 3
        %v461 = vsel %vm459, %v457, 0.0
        %v462 = vsel %vm460, %v458, 0.0
        %v463 = vsel %vm282, %v461, 0.0
        %v464 = vsel %vm282, %v462, 0.0
        %v465 = vadd.f32 %v463, %v464
        %v466 = vrot.slane %v465, 4
        %v467 = vadd.f32 %v465, %v466
        %v468 = vrot.slane %v467, 2
        %v469 = vadd.f32 %v467, %v468
        %v470 = vrot.slane %v469, 1
        %v471 = vadd.f32 %v469, %v470
        %v472 = vsel %vm282, %v457, 0.0
        %v473 = vsel %vm282, %v458, 0.0
        %v474 = vadd.f32 %v472, %v473
        %v475 = vrot.slane %v474, 4
        %v476 = vadd.f32 %v474, %v475
        %v477 = vrot.slane %v476, 2
        %v478 = vadd.f32 %v476, %v477
        %v479 = vrot.slane %v478, 1
        %v480 = vadd.f32 %v478, %v479
        %v481 = vsel %vm459, 1, 0
        %v482 = vsel %vm460, 1, 0
        %v483 = vcvt.s32.f32 %v481
        %v484 = vcvt.s32.f32 %v482
        %v485 = vsel %vm282, %v483, 0.0
        %v486 = vsel %vm282, %v484, 0.0
        %v487 = vadd.f32 %v485, %v486
        %v488 = vrot.slane %v487, 4
        %v489 = vadd.f32 %v487, %v488
        %v490 = vrot.slane %v489, 2
        %v491 = vadd.f32 %v489, %v490
        %v492 = vrot.slane %v491, 1
        %v493 = vadd.f32 %v491, %v492
        %v494 = vadd.f32 %v480, %v493
        %v495 = vld [vmem:[#allocation7] sm:$0xf]
        %vm496 = vcmask 1040384
        %v497 = vsel %vm496, %v357, %v395
        %vm498 = vcmask 1041408
        %v499 = vsel %vm498, %v497, %v433
        %vm500 = vcmask 1042432
        %v501 = vsel %vm500, %v499, %v471
        %v502 = vadd.f32 %v495, %v501
        %vm503 = vcmask 125952
        %504 = vst.msk [vmem:[#allocation7] sm:$0xf] %vm503, %v502
        %v505 = vld [vmem:[#allocation8] sm:$0xf]
        %v506 = vsel %vm496, %v380, %v418
        %v507 = vsel %vm498, %v506, %v456
        %v508 = vsel %vm500, %v507, %v494
        %v509 = vadd.f32 %v505, %v508
        %510 = vst.msk [vmem:[#allocation8] sm:$0xf] %vm503, %v509
        // Predicated region
        $region41: #{tpu_custom_call.1} parent=27 // pred_check
          %p511 = pneg %p120
        $region42: #{tpu_custom_call.1} parent=27 // pred_check_branch
          %513 = sbr.rel (%p511) target = $region44
        $region43: #{tpu_custom_call.1} parent=27 // pred_region
          %s515 = ssub.s32 64, 64
          %516 = vsyncadd [#allocation4], %s515
          %s517 = smul.addr %s28, 64
          %s518 = scalar_lea.hbm %s2, %s517
          %s520 = sshll.u32 [#allocation7], 4
          %s521 = int_to_ptr.vmem [resolvable:$true] %s520
          %523 = dma.vmem_to_hbm [thread:$0]  %s521, 64, %s518, [#allocation4]
        $region44: #{tpu_custom_call.1} parent=27 // pred_fallthru
          _
        // Predicated region
        $region45: #{tpu_custom_call.1} parent=27 // pred_check
          %p524 = pneg %p146
        $region46: #{tpu_custom_call.1} parent=27 // pred_check_branch
          %526 = sbr.rel (%p524) target = $region48
        $region47: #{tpu_custom_call.1} parent=27 // pred_region
          %s528 = ssub.s32 64, 64
          %529 = vsyncadd [#allocation9], %s528
          %s530 = smul.addr %s28, 64
          %s531 = scalar_lea.hbm %s3, %s530
          %s533 = sshll.u32 [#allocation8], 4
          %s534 = int_to_ptr.vmem [resolvable:$true] %s533
          %536 = dma.vmem_to_hbm [thread:$0]  %s534, 64, %s531, [#allocation9]
        $region48: #{tpu_custom_call.1} parent=27 // pred_fallthru
          _
        // Predicated region
        $region49: #{tpu_custom_call.1} parent=27 // pred_check
          %p537 = pneg %p120
        $region50: #{tpu_custom_call.1} parent=27 // pred_check_branch
          %539 = sbr.rel (%p537) target = $region52
        $region51: #{tpu_custom_call.1} parent=27 // pred_region
          %540 = dma.done [#allocation4], 64
        $region52: #{tpu_custom_call.1} parent=27 // pred_fallthru
          _
        // Predicated region
        $region53: #{tpu_custom_call.1} parent=27 // pred_check
          %p541 = pneg %p146
        $region54: #{tpu_custom_call.1} parent=27 // pred_check_branch
          %543 = sbr.rel (%p541) target = $region56
        $region55: #{tpu_custom_call.1} parent=27 // pred_region
          %544 = dma.done [#allocation9], 64
        $region56: #{tpu_custom_call.1} parent=27 // pred_fallthru
          _
      $region28: #{tpu_custom_call.1} parent=5 // pred_fallthru
        _
      %p545 = scmp.le.s32.totalorder 2, %s18
      // Predicated region
      $region57: #{tpu_custom_call.1} parent=5 // pred_check
        %p546 = pneg %p545
      $region58: #{tpu_custom_call.1} parent=5 // pred_check_branch
        %548 = sbr.rel (%p546) target = $region60
      $region59: #{tpu_custom_call.1} parent=5 // pred_region
        %s549 = ssub.s32 %s18, 2
      $region60: #{tpu_custom_call.1} parent=5 // pred_fallthru
        _
    $region6: #{tpu_custom_call.1} parent=1 // loop_footer
      %s22 = sadd.s32 1, %s18
    $region7: #{tpu_custom_call.1} parent=1 // loop_footer_branch
      %17 = sbr.rel target = $region3
    $region8: #{tpu_custom_call.1} parent=1 // loop_exit
      _
    %550 = vsyncpa [#allocation3], 1
    %s551 = scalar_lea.sflag [#allocation3], 1
    %552 = vsyncpa %s551, 1
    %553 = vsyncpa [#allocation6], 1
    %s554 = scalar_lea.sflag [#allocation6], 1
    %555 = vsyncpa %s554, 1
    %556 = vsyncpa [#allocation4], 1
    %s557 = scalar_lea.sflag [#allocation4], 1
    %558 = vsyncpa %s557, 1
    %559 = vsyncpa [#allocation9], 1

</llo_original>
